<compile_context>
chip_gen: v7x
topology: tpu7x:2x2x1
jax: 0.10.0
libtpu: 0.0.40
codegen_flags: <defaults>
</compile_context>

<pallas_src>
import jax
import jax.numpy as jnp
from jax.experimental import pallas as pl
from jax.experimental.pallas import tpu as pltpu

_LANE = 128


def _temporal_kernel(x_ref, tab_ref, w2_ref, w3_ref, consts_ref, o_ref):
    """Fused embedding + 4-layer MLP (BN folded), batch along lanes.

    x_ref:      (2, bt)  f32   row 0 = time-bucket feature, row 1 = weekday
    tab_ref:    (32, 16) f32   folded Emb+concat+Linear1+BN1; col 15 = bias
    w2_ref:     (16, 32) f32   folded Linear2+BN2 weights
    w3_ref:     (8, 16)  f32   folded Linear3+BN3 weights
    consts_ref: (32, 2)  f32   [:16,0]=c2  [16:24,0]=c3  [:8,1]=w4  [8,1]=b4
    o_ref:      (1, bt)  f32
    """
    bt = x_ref.shape[1]
    xv = x_ref[...]                                               # (2, bt)

    # --- Two-hot build (clamp(long(x)), matches torch truncate-toward-zero) --
    idx_t = jnp.clip(xv[0:1, :].astype(jnp.int32), 0, 3)          # (1, bt)
    idx_w = jnp.clip(xv[1:2, :].astype(jnp.int32), 0, 6)          # (1, bt)
    pos = jax.lax.broadcasted_iota(jnp.int32, (16, bt), 0)        # sublane iota
    # Row 15 is always hot: tab column 15 carries the folded first-layer bias.
    two_hot = ((pos == idx_t) | (pos == idx_w + 8) | (pos == 15)).astype(jnp.float32)

    # --- Emb + concat + Linear(16,32) + BN(32) + ReLU (bias inside tab) ------
    h = jnp.dot(tab_ref[...], two_hot, preferred_element_type=jnp.float32)
    h = jnp.maximum(h, 0.0)                                       # (32, bt)
    # Dropout(0.5): identity in eval mode.

    # --- Linear(32,16) + BN(16) + ReLU ---------------------------------------
    h = jnp.dot(w2_ref[...], h, preferred_element_type=jnp.float32)
    h = jnp.maximum(h + consts_ref[0:16, 0:1], 0.0)               # (16, bt)

    # --- Linear(16,8) + BN(8) + ReLU -----------------------------------------
    h = jnp.dot(w3_ref[...], h, preferred_element_type=jnp.float32)
    h = jnp.maximum(h + consts_ref[16:24, 0:1], 0.0)              # (8, bt)

    # --- Linear(8,1): VPU mul + sublane (XLU) reduce, lane-dense output ------
    w4 = consts_ref[0:8, 1:2]                                     # (8, 1)
    b4 = consts_ref[8:9, 1:2]                                     # (1, 1)
    out = jnp.sum(h * w4, axis=0, keepdims=True) + b4             # (1, bt)
    o_ref[...] = out.astype(o_ref.dtype)


def _is_multi_tensorcore_chip():
    """True only for chips with >1 TensorCore (v7x); detection is best-effort."""
    try:
        kind = jax.devices()[0].device_kind.lower().replace(" ", "")
    except Exception:
        return False
    return "v7" in kind or "tpu7" in kind


def temporal_model_forward(x, params, *, batch_tile=16384):
    """TemporalModel eval-mode forward via a single fused pallas_call.

    x: (B, 2) float32 (col 0: time_bucket-ish, col 1: weekday-ish).
    params: PyTorch-layout parameters (see init_params). Returns (B, 1) f32.
    """
    B, F = x.shape
    assert F == 2
    eps = 1e-5

    # ---- Fold eval-mode BatchNorm into the preceding Linear -----------------
    def fold_bn(gamma, beta, rmean, rvar):
        s = gamma / jnp.sqrt(rvar + eps)
        return s, beta - rmean * s

    s1, t1 = fold_bn(params["g1"], params["beta1"], params["rm1"], params["rv1"])
    s2, t2 = fold_bn(params["g2"], params["beta2"], params["rm2"], params["rv2"])
    s3, t3 = fold_bn(params["g3"], params["beta3"], params["rm3"], params["rv3"])

    w1p = params["w1"] * s1[:, None]                 # (32, 16)
    c1 = params["b1"] * s1 + t1                      # (32,)
    w2p = params["w2"] * s2[:, None]                 # (16, 32)
    c2 = params["b2"] * s2 + t2                      # (16,)
    w3p = params["w3"] * s3[:, None]                 # (8, 16)
    c3 = params["b3"] * s3 + t3                      # (8,)

    # ---- Fold embedding tables + concat + first-layer bias into tab ---------
    # col t   (t in [0,3]) : W1'[:, :8]  @ TimeEmb[t]
    # col 8+w (w in [0,6]) : W1'[:, 8:]  @ WeekdayEmb[w]
    # col 15               : c1 (two_hot row 15 is always 1)
    tab = jnp.zeros((32, 16), jnp.float32)
    tab = tab.at[:, 0:4].set(w1p[:, 0:8] @ params["emb_tb"].T)
    tab = tab.at[:, 8:15].set(w1p[:, 8:16] @ params["emb_wd"].T)
    tab = tab.at[:, 15].set(c1)

    # ---- Consolidated tiny constants ----------------------------------------
    consts = jnp.zeros((32, 2), jnp.float32)
    consts = consts.at[0:16, 0].set(c2)
    consts = consts.at[16:24, 0].set(c3)
    consts = consts.at[0:8, 1].set(params["w4"].reshape(8))
    consts = consts.at[8, 1].set(params["b4"][0])

    # ---- Layout: batch -> lanes; pick a big lane tile ------------------------
    xt = jnp.asarray(x, jnp.float32).T               # (2, B)
    b128 = pl.cdiv(B, _LANE) * _LANE
    bt = min(int(batch_tile), b128)
    # Only split a single-step grid on multi-TensorCore chips (v7x).
    if _is_multi_tensorcore_chip() and bt >= b128 and b128 >= 2 * _LANE:
        bt = b128 // 2
    bt = max(_LANE, (bt // _LANE) * _LANE)           # lane-tile granularity
    Bp = pl.cdiv(B, bt) * bt
    if Bp > B:
        xt = jnp.pad(xt, ((0, 0), (0, Bp - B)))      # zero rows -> idx 0, sliced off
    grid = (Bp // bt,)

    def const_spec(shape):
        return pl.BlockSpec(shape, lambda i: (0, 0))

    out = pl.pallas_call(
        _temporal_kernel,
        out_shape=jax.ShapeDtypeStruct((1, Bp), jnp.float32),
        grid_spec=pl.GridSpec(
            grid=grid,
            in_specs=[
                pl.BlockSpec((2, bt), lambda i: (0, i)),   # x (batch in lanes)
                const_spec((32, 16)),                      # tab (emb+L1+BN1+b1)
                const_spec((16, 32)),                      # w2 (L2+BN2)
                const_spec((8, 16)),                       # w3 (L3+BN3)
                const_spec((32, 2)),                       # c2 / c3 / w4 / b4
            ],
            out_specs=pl.BlockSpec((1, bt), lambda i: (0, i)),
        ),
        compiler_params=pltpu.CompilerParams(
            dimension_semantics=("parallel",),
            vmem_limit_bytes=32 * 1024 * 1024,       # safe on v5e/v6e/v7x
        ),
    )(xt, tab, w2p, w3p, consts)

    return out[:, :B].T                               # (B, 1)


def init_params(key):
    """Deterministic synthetic parameters matching the nn.Module shapes."""
    ks = jax.random.split(key, 24)
    p = {}
    p["emb_tb"] = jax.random.normal(ks[0], (4, 8), jnp.float32) * 0.5
    p["emb_wd"] = jax.random.normal(ks[1], (7, 8), jnp.float32) * 0.5
    # Linear(16, 32) + BN(32)
    p["w1"] = jax.random.normal(ks[2], (32, 16), jnp.float32) * 0.1
    p["b1"] = jax.random.normal(ks[3], (32,), jnp.float32) * 0.05
    p["g1"] = 1.0 + 0.1 * jax.random.normal(ks[4], (32,), jnp.float32)
    p["beta1"] = 0.05 * jax.random.normal(ks[5], (32,), jnp.float32)
    p["rm1"] = 0.1 * jax.random.normal(ks[6], (32,), jnp.float32)
    p["rv1"] = jnp.abs(1.0 + 0.1 * jax.random.normal(ks[7], (32,), jnp.float32))
    # Linear(32, 16) + BN(16)
    p["w2"] = jax.random.normal(ks[8], (16, 32), jnp.float32) * 0.1
    p["b2"] = jax.random.normal(ks[9], (16,), jnp.float32) * 0.05
    p["g2"] = 1.0 + 0.1 * jax.random.normal(ks[10], (16,), jnp.float32)
    p["beta2"] = 0.05 * jax.random.normal(ks[11], (16,), jnp.float32)
    p["rm2"] = 0.1 * jax.random.normal(ks[12], (16,), jnp.float32)
    p["rv2"] = jnp.abs(1.0 + 0.1 * jax.random.normal(ks[13], (16,), jnp.float32))
    # Linear(16, 8) + BN(8)
    p["w3"] = jax.random.normal(ks[14], (8, 16), jnp.float32) * 0.1
    p["b3"] = jax.random.normal(ks[15], (8,), jnp.float32) * 0.05
    p["g3"] = 1.0 + 0.1 * jax.random.normal(ks[16], (8,), jnp.float32)
    p["beta3"] = 0.05 * jax.random.normal(ks[17], (8,), jnp.float32)
    p["rm3"] = 0.1 * jax.random.normal(ks[18], (8,), jnp.float32)
    p["rv3"] = jnp.abs(1.0 + 0.1 * jax.random.normal(ks[19], (8,), jnp.float32))
    # Linear(8, 1)
    p["w4"] = jax.random.normal(ks[20], (1, 8), jnp.float32) * 0.1
    p["b4"] = jax.random.normal(ks[21], (1,), jnp.float32) * 0.05
    return p


def reference_forward(x, params):
    """Pure-JAX reference (eval-mode BN, dropout identity)."""
    eps = 1e-5
    tb = jnp.clip(x[:, 0].astype(jnp.int32), 0, 3)
    wd = jnp.clip(x[:, 1].astype(jnp.int32), 0, 6)
    h = jnp.concatenate([params["emb_tb"][tb], params["emb_wd"][wd]], axis=1)

    def lin_bn_relu(h, w, b, g, beta, rm, rv):
        h = h @ w.T + b
        h = (h - rm) / jnp.sqrt(rv + eps) * g + beta
        return jnp.maximum(h, 0.0)

    h = lin_bn_relu(h, params["w1"], params["b1"], params["g1"],
                    params["beta1"], params["rm1"], params["rv1"])
    h = lin_bn_relu(h, params["w2"], params["b2"], params["g2"],
                    params["beta2"], params["rm2"], params["rv2"])
    h = lin_bn_relu(h, params["w3"], params["b3"], params["g3"],
                    params["beta3"], params["rm3"], params["rv3"])
    return h @ params["w4"].T + params["b4"]


if __name__ == "__main__":
    key = jax.random.PRNGKey(0)
    kx, kp = jax.random.split(key)
    k_tb, k_wd = jax.random.split(kx)

    batch = 300  # small demo batch; not a multiple of 128 -> exercises padding
    x = jnp.stack([
        jax.random.uniform(k_tb, (batch,), jnp.float32, minval=-1.0, maxval=5.0),
        jax.random.uniform(k_wd, (batch,), jnp.float32, minval=-1.0, maxval=8.0),
    ], axis=1)
    params = init_params(kp)

    ref = reference_forward(x, params)

    # Default big-tile path (1 or 2 grid steps depending on chip generation).
    out = temporal_model_forward(x, params)
    out = jax.block_until_ready(out)
    assert out.shape == (batch, 1)
    assert jnp.allclose(out, ref, atol=1e-4, rtol=1e-4), (
        f"mismatch (default tile): max abs err {jnp.max(jnp.abs(out - ref))}")

    # Small-tile path: forces a multi-step grid to exercise the pipeline.
    out2 = temporal_model_forward(x, params, batch_tile=128)
    out2 = jax.block_until_ready(out2)
    assert jnp.allclose(out2, ref, atol=1e-4, rtol=1e-4), (
        f"mismatch (tiled): max abs err {jnp.max(jnp.abs(out2 - ref))}")

    print("KERNEL_OK")
</pallas_src>

<mosaic_0001>
module attributes {stable_mosaic.version = 11 : i64} {
  func.func @_temporal_kernel(%arg0: i32, %arg1: memref<2x384xf32, #tpu.memory_space<vmem>>, %arg2: memref<32x16xf32, #tpu.memory_space<vmem>>, %arg3: memref<16x32xf32, #tpu.memory_space<vmem>>, %arg4: memref<8x16xf32, #tpu.memory_space<vmem>>, %arg5: memref<32x2xf32, #tpu.memory_space<vmem>>, %arg6: memref<1x384xf32, #tpu.memory_space<vmem>>) attributes {dimension_semantics = [#tpu.dimension_semantics<parallel>], iteration_bounds = array<i64: 1>, scalar_prefetch = 0 : i64, scratch_operands = 0 : i64, tpu.core_type = #tpu.core_type<tc>, window_params = [{transform_indices = @transform_0, window_bounds = array<i64: 2, 384>}, {pipeline_mode = #tpu.pipeline_mode<synchronous>, transform_indices = @transform_1, window_bounds = array<i64: 32, 16>}, {pipeline_mode = #tpu.pipeline_mode<synchronous>, transform_indices = @transform_2, window_bounds = array<i64: 16, 32>}, {pipeline_mode = #tpu.pipeline_mode<synchronous>, transform_indices = @transform_3, window_bounds = array<i64: 8, 16>}, {pipeline_mode = #tpu.pipeline_mode<synchronous>, transform_indices = @transform_4, window_bounds = array<i64: 32, 2>}, {transform_indices = @transform_5, window_bounds = array<i64: 1, 384>}]} {
    %c0 = arith.constant 0 : index
    %c0_0 = arith.constant 0 : index
    %0 = vector.load %arg1[%c0, %c0_0] : memref<2x384xf32, #tpu.memory_space<vmem>>, vector<2x384xf32>
    %1 = vector.extract_strided_slice %0 {offsets = [0, 0], sizes = [1, 384], strides = [1, 1]} : vector<2x384xf32> to vector<1x384xf32>
    %2 = arith.fptosi %1 : vector<1x384xf32> to vector<1x384xi32>
    %c0_i32 = arith.constant 0 : i32
    %c3_i32 = arith.constant 3 : i32
    %3 = vector.broadcast %c0_i32 : i32 to vector<1x384xi32>
    %4 = arith.maxsi %3, %2 : vector<1x384xi32>
    %5 = vector.broadcast %c3_i32 : i32 to vector<1x384xi32>
    %6 = arith.minsi %5, %4 : vector<1x384xi32>
    %7 = vector.extract_strided_slice %0 {offsets = [1, 0], sizes = [1, 384], strides = [1, 1]} : vector<2x384xf32> to vector<1x384xf32>
    %8 = arith.fptosi %7 : vector<1x384xf32> to vector<1x384xi32>
    %c0_i32_1 = arith.constant 0 : i32
    %c6_i32 = arith.constant 6 : i32
    %9 = vector.broadcast %c0_i32_1 : i32 to vector<1x384xi32>
    %10 = arith.maxsi %9, %8 : vector<1x384xi32>
    %11 = vector.broadcast %c6_i32 : i32 to vector<1x384xi32>
    %12 = arith.minsi %11, %10 : vector<1x384xi32>
    %13 = tpu.iota {dimensions = array<i32: 0>} : vector<16x384xi32>
    %14 = vector.broadcast %6 : vector<1x384xi32> to vector<16x384xi32>
    %15 = arith.cmpi eq, %13, %14 : vector<16x384xi32>
    %c8_i32 = arith.constant 8 : i32
    %16 = vector.broadcast %c8_i32 : i32 to vector<1x384xi32>
    %17 = arith.addi %12, %16 : vector<1x384xi32>
    %18 = vector.broadcast %17 : vector<1x384xi32> to vector<16x384xi32>
    %19 = arith.cmpi eq, %13, %18 : vector<16x384xi32>
    %20 = arith.ori %15, %19 : vector<16x384xi1>
    %c15_i32 = arith.constant 15 : i32
    %21 = vector.broadcast %c15_i32 : i32 to vector<16x384xi32>
    %22 = arith.cmpi eq, %13, %21 : vector<16x384xi32>
    %23 = arith.ori %20, %22 : vector<16x384xi1>
    %24 = arith.extui %23 : vector<16x384xi1> to vector<16x384xi32>
    %25 = arith.sitofp %24 : vector<16x384xi32> to vector<16x384xf32>
    %c0_2 = arith.constant 0 : index
    %c0_3 = arith.constant 0 : index
    %26 = vector.load %arg2[%c0_2, %c0_3] : memref<32x16xf32, #tpu.memory_space<vmem>>, vector<32x16xf32>
    %cst = arith.constant dense<0.000000e+00> : vector<32x384xf32>
    %27 = tpu.matmul %26, %25, %cst {dimension_numbers = #tpu.dot_dimension_numbers<[1], [0], [0], [1], [0, 0, 1, 1], [], []>} : vector<32x16xf32>, vector<16x384xf32>, vector<32x384xf32> -> vector<32x384xf32>
    %cst_4 = arith.constant 0.000000e+00 : f32
    %28 = vector.broadcast %cst_4 : f32 to vector<32x384xf32>
    %29 = arith.maximumf %27, %28 : vector<32x384xf32>
    %c0_5 = arith.constant 0 : index
    %c0_6 = arith.constant 0 : index
    %30 = vector.load %arg3[%c0_5, %c0_6] : memref<16x32xf32, #tpu.memory_space<vmem>>, vector<16x32xf32>
    %cst_7 = arith.constant dense<0.000000e+00> : vector<16x384xf32>
    %31 = tpu.matmul %30, %29, %cst_7 {dimension_numbers = #tpu.dot_dimension_numbers<[1], [0], [0], [1], [0, 0, 1, 1], [], []>} : vector<16x32xf32>, vector<32x384xf32>, vector<16x384xf32> -> vector<16x384xf32>
    %c0_8 = arith.constant 0 : index
    %c0_9 = arith.constant 0 : index
    %32 = vector.load %arg5[%c0_8, %c0_9] : memref<32x2xf32, #tpu.memory_space<vmem>>, vector<16x1xf32>
    %33 = vector.broadcast %32 : vector<16x1xf32> to vector<16x384xf32>
    %34 = arith.addf %31, %33 : vector<16x384xf32>
    %cst_10 = arith.constant 0.000000e+00 : f32
    %35 = vector.broadcast %cst_10 : f32 to vector<16x384xf32>
    %36 = arith.maximumf %34, %35 : vector<16x384xf32>
    %c0_11 = arith.constant 0 : index
    %c0_12 = arith.constant 0 : index
    %37 = vector.load %arg4[%c0_11, %c0_12] : memref<8x16xf32, #tpu.memory_space<vmem>>, vector<8x16xf32>
    %cst_13 = arith.constant dense<0.000000e+00> : vector<8x384xf32>
    %38 = tpu.matmul %37, %36, %cst_13 {dimension_numbers = #tpu.dot_dimension_numbers<[1], [0], [0], [1], [0, 0, 1, 1], [], []>} : vector<8x16xf32>, vector<16x384xf32>, vector<8x384xf32> -> vector<8x384xf32>
    %c16 = arith.constant 16 : index
    %c0_14 = arith.constant 0 : index
    %39 = vector.load %arg5[%c16, %c0_14] : memref<32x2xf32, #tpu.memory_space<vmem>>, vector<8x1xf32>
    %40 = vector.broadcast %39 : vector<8x1xf32> to vector<8x384xf32>
    %41 = arith.addf %38, %40 : vector<8x384xf32>
    %cst_15 = arith.constant 0.000000e+00 : f32
    %42 = vector.broadcast %cst_15 : f32 to vector<8x384xf32>
    %43 = arith.maximumf %41, %42 : vector<8x384xf32>
    %c0_16 = arith.constant 0 : index
    %c1 = arith.constant 1 : index
    %44 = vector.load %arg5[%c0_16, %c1] : memref<32x2xf32, #tpu.memory_space<vmem>>, vector<8x1xf32>
    %c8 = arith.constant 8 : index
    %c1_17 = arith.constant 1 : index
    %45 = vector.load %arg5[%c8, %c1_17] : memref<32x2xf32, #tpu.memory_space<vmem>>, vector<1x1xf32>
    %46 = vector.broadcast %44 : vector<8x1xf32> to vector<8x384xf32>
    %47 = arith.mulf %43, %46 : vector<8x384xf32>
    %cst_18 = arith.constant dense<0.000000e+00> : vector<384xf32>
    %48 = vector.multi_reduction <add>, %47, %cst_18 [0] : vector<8x384xf32> to vector<384xf32>
    %49 = vector.shape_cast %48 : vector<384xf32> to vector<1x384xf32>
    %50 = vector.broadcast %45 : vector<1x1xf32> to vector<1x384xf32>
    %51 = arith.addf %49, %50 : vector<1x384xf32>
    %c0_19 = arith.constant 0 : index
    %c0_20 = arith.constant 0 : index
    %52 = vector.load %arg6[%c0_19, %c0_20] : memref<1x384xf32, #tpu.memory_space<vmem>>, vector<1x384xf32>
    tpu.vector_store %arg6[%c0_19, %c0_20], %51 {strides = array<i32>} : memref<1x384xf32, #tpu.memory_space<vmem>>, vector<1x384xf32>,
    return
  }
  func.func @transform_0(%arg0: i32) -> (i32, i32) {
    %c0_i32 = arith.constant 0 : i32
    %c0_i32_0 = arith.constant 0 : i32
    return %c0_i32, %arg0 : i32, i32
  }
  func.func @transform_1(%arg0: i32) -> (i32, i32) {
    %c0_i32 = arith.constant 0 : i32
    %c0_i32_0 = arith.constant 0 : i32
    %c0_i32_1 = arith.constant 0 : i32
    return %c0_i32, %c0_i32_0 : i32, i32
  }
  func.func @transform_2(%arg0: i32) -> (i32, i32) {
    %c0_i32 = arith.constant 0 : i32
    %c0_i32_0 = arith.constant 0 : i32
    %c0_i32_1 = arith.constant 0 : i32
    return %c0_i32, %c0_i32_0 : i32, i32
  }
  func.func @transform_3(%arg0: i32) -> (i32, i32) {
    %c0_i32 = arith.constant 0 : i32
    %c0_i32_0 = arith.constant 0 : i32
    %c0_i32_1 = arith.constant 0 : i32
    return %c0_i32, %c0_i32_0 : i32, i32
  }
  func.func @transform_4(%arg0: i32) -> (i32, i32) {
    %c0_i32 = arith.constant 0 : i32
    %c0_i32_0 = arith.constant 0 : i32
    %c0_i32_1 = arith.constant 0 : i32
    return %c0_i32, %c0_i32_0 : i32, i32
  }
  func.func @transform_5(%arg0: i32) -> (i32, i32) {
    %c0_i32 = arith.constant 0 : i32
    %c0_i32_0 = arith.constant 0 : i32
    return %c0_i32, %arg0 : i32, i32
  }
}

</mosaic_0001>

<llo_original>
// kernel: tpu_custom_call.1
$region0: #{tpu_custom_call.1}
  #allocation0 [shape = 'u32[]', space=smem, size = 0x4, offset = 0x4, fixed_abs, tag = 'smem constant byte address 0x4 - core index']
  #allocation1 [shape = 'u32[144,128]{1,0:T(1,128)}', space=vmem, size = 0x12000, scoped, tag = 'internal scratch']
  %s0 = inlined_call_operand.vmem [shape: f32[2,384], index: 0, kind: input, shape index: {}]
  %s1 = inlined_call_operand.vmem [shape: f32[32,16], index: 1, kind: input, shape index: {}]
  %s2 = inlined_call_operand.vmem [shape: f32[16,32], index: 2, kind: input, shape index: {}]
  %s3 = inlined_call_operand.vmem [shape: f32[8,16], index: 3, kind: input, shape index: {}]
  %s4 = inlined_call_operand.vmem [shape: f32[32,2], index: 4, kind: input, shape index: {}]
  %s5 = inlined_call_operand.hbm [shape: f32[1,384], index: 5, kind: output, shape index: {}]
  %s6 = sld [smem:[#allocation0]]
  $region30: #{tpu_custom_call.1} parent=0
    _
  %s8 = ssub.s32 1, %s6
  %s9 = scalar_select 0, %s8, %s6
  $region1: #{tpu_custom_call.1} parent=0
    #allocation2 [shape = 'u8[1536]{0}', space=vmem, size = 0x800, scoped, tag = 'output window, operand 0, single buffered']
    #allocation3 [shape = 's32[1]{0}', space=sflag, size = 0x4, scoped, tag = 'scoped memory for tpu_custom_call.1']
    %10 = vsyncpa [#allocation3], 0
    // Predicated region
    $region2: #{tpu_custom_call.1} parent=1 // pred_check
      _
    $region3: #{tpu_custom_call.1} parent=1 // pred_check_branch
      %12 = sbr.rel (0) target = $region5
    $region4: #{tpu_custom_call.1} parent=1 // pred_region
      _
    $region5: #{tpu_custom_call.1} parent=1 // pred_fallthru
      _
    // Predicated region
    $region6: #{tpu_custom_call.1} parent=1 // pred_check
      _
    $region7: #{tpu_custom_call.1} parent=1 // pred_check_branch
      %14 = sbr.rel (0) target = $region9
    $region8: #{tpu_custom_call.1} parent=1 // pred_region
      _
    $region9: #{tpu_custom_call.1} parent=1 // pred_fallthru
      _
    // Predicated region
    $region10: #{tpu_custom_call.1} parent=1 // pred_check
      _
    $region11: #{tpu_custom_call.1} parent=1 // pred_check_branch
      %16 = sbr.rel (0) target = $region13
    $region12: #{tpu_custom_call.1} parent=1 // pred_region
      _
    $region13: #{tpu_custom_call.1} parent=1 // pred_fallthru
      _
    // Predicated region
    $region14: #{tpu_custom_call.1} parent=1 // pred_check
      _
    $region15: #{tpu_custom_call.1} parent=1 // pred_check_branch
      %18 = sbr.rel (0) target = $region17
    $region16: #{tpu_custom_call.1} parent=1 // pred_region
      _
    $region17: #{tpu_custom_call.1} parent=1 // pred_fallthru
      _
    // Predicated region
    $region18: #{tpu_custom_call.1} parent=1 // pred_check
      _
    $region19: #{tpu_custom_call.1} parent=1 // pred_check_branch
      %20 = sbr.rel (0) target = $region21
    $region20: #{tpu_custom_call.1} parent=1 // pred_region
      _
    $region21: #{tpu_custom_call.1} parent=1 // pred_fallthru
      _
    %v21 = vld [vmem:[%s0] sm:$0x3f]
    %v22 = vcvt.f32.s32.to.zero.pseudo %v21
    %vm23 = vcmp.gt.s32.totalorder %v22, 0
    %v24 = vsel %vm23, %v22, 0
    %vm25 = vcmp.lt.s32.totalorder %v24, 3
    %v26 = vsel %vm25, %v24, 3
    %vm27 = vcmp.lt.s32.totalorder %v24, 6
    %v28 = vsel %vm27, %v24, 6
    %v29 = vlaneseq
    %v30 = vshrl.u32 %v29, 7
    %v31 = vadd.s32 %v30, 8
    %v32 = vlaneseq
    %v33 = vshrl.u32 %v32, 7
    %v34 = vsub.s32 0, %v33
    %v35 = vrot.slane %v26, %v34
    %v36 = vlaneseq
    %v37 = vshrl.u32 %v36, 7
    %v38 = vsub.s32 2, %v37
    %v39 = vrot.slane %v26, %v38
    %v40 = vlaneseq
    %v41 = vshrl.u32 %v40, 7
    %v42 = vsub.s32 4, %v41
    %v43 = vrot.slane %v26, %v42
    %v44 = vlaneseq
    %v45 = vshrl.u32 %v44, 7
    %v46 = vsub.s32 0, %v45
    %v47 = vrot.slane %v35, %v46
    %v48 = vlaneseq
    %v49 = vshrl.u32 %v48, 7
    %v50 = vsub.s32 0, %v49
    %v51 = vrot.slane %v39, %v50
    %v52 = vlaneseq
    %v53 = vshrl.u32 %v52, 7
    %v54 = vsub.s32 0, %v53
    %v55 = vrot.slane %v43, %v54
    %vm56 = vcmp.eq.s32.totalorder %v30, %v47
    %vm57 = vcmp.eq.s32.totalorder %v30, %v51
    %vm58 = vcmp.eq.s32.totalorder %v30, %v55
    %vm59 = vcmp.eq.s32.totalorder %v31, %v47
    %vm60 = vcmp.eq.s32.totalorder %v31, %v51
    %vm61 = vcmp.eq.s32.totalorder %v31, %v55
    %v62 = vadd.s32 %v28, 8
    %v63 = vlaneseq
    %v64 = vshrl.u32 %v63, 7
    %v65 = vsub.s32 1, %v64
    %v66 = vrot.slane %v62, %v65
    %v67 = vlaneseq
    %v68 = vshrl.u32 %v67, 7
    %v69 = vsub.s32 3, %v68
    %v70 = vrot.slane %v62, %v69
    %v71 = vlaneseq
    %v72 = vshrl.u32 %v71, 7
    %v73 = vsub.s32 5, %v72
    %v74 = vrot.slane %v62, %v73
    %v75 = vlaneseq
    %v76 = vshrl.u32 %v75, 7
    %v77 = vsub.s32 1, %v76
    %v78 = vrot.slane %v66, %v77
    %v79 = vlaneseq
    %v80 = vshrl.u32 %v79, 7
    %v81 = vsub.s32 1, %v80
    %v82 = vrot.slane %v70, %v81
    %v83 = vlaneseq
    %v84 = vshrl.u32 %v83, 7
    %v85 = vsub.s32 1, %v84
    %v86 = vrot.slane %v74, %v85
    %vm87 = vcmp.eq.s32.totalorder %v30, %v78
    %vm88 = vcmp.eq.s32.totalorder %v30, %v82
    %vm89 = vcmp.eq.s32.totalorder %v30, %v86
    %vm90 = vcmp.eq.s32.totalorder %v31, %v78
    %vm91 = vcmp.eq.s32.totalorder %v31, %v82
    %vm92 = vcmp.eq.s32.totalorder %v31, %v86
    %vm93 = vmor %vm56, %vm87
    %vm94 = vmor %vm57, %vm88
    %vm95 = vmor %vm58, %vm89
    %vm96 = vmor %vm59, %vm90
    %vm97 = vmor %vm60, %vm91
    %vm98 = vmor %vm61, %vm92
    %vm99 = vcmp.eq.s32.totalorder %v30, 15
    %vm100 = vcmp.eq.s32.totalorder %v31, 15
    %vm101 = vmor %vm93, %vm99
    %vm102 = vmor %vm94, %vm99
    %vm103 = vmor %vm95, %vm99
    %vm104 = vmor %vm96, %vm100
    %vm105 = vmor %vm97, %vm100
    %vm106 = vmor %vm98, %vm100
    %v107 = vsel %vm101, 1, 0
    %v108 = vsel %vm102, 1, 0
    %v109 = vsel %vm103, 1, 0
    %v110 = vsel %vm104, 1, 0
    %v111 = vsel %vm105, 1, 0
    %v112 = vsel %vm106, 1, 0
    %v113 = vcvt.s32.f32 %v107
    %v114 = vcvt.s32.f32 %v108
    %v115 = vcvt.s32.f32 %v109
    %v116 = vcvt.s32.f32 %v110
    %v117 = vcvt.s32.f32 %v111
    %v118 = vcvt.s32.f32 %v112
    %v119 = vld [vmem:[%s1] sm:$0xff]
    %v120 = vld [vmem:[%s1 + $0x8] sm:$0xff]
    %v121 = vld [vmem:[%s1 + $0x10] sm:$0xff]
    %v122 = vld [vmem:[%s1 + $0x18] sm:$0xff]
    %vm123 = vcmask 130048
    %v125 = vsel %vm123, %v119, 0
    %v128 = vsel %vm123, %v120, 0
    %v131 = vsel %vm123, %v121, 0
    %v134 = vsel %vm123, %v122, 0
    %136 = vmatprep.subr.mxu0 %v114
    %137 = vmatpush1.msra.mxu0 %v113
    %138 = vmatprep.subr.mxu0 %v117
    %139 = vmatpush1.msra.mxu0 %v116
    %140 = vmatprep.subr.mxu0 0.0
    %141 = vmatpush1.msra.mxu0 0.0
    %142 = vmatprep.subr.mxu0 0.0
    %143 = vmatpush1.msra.mxu0 0.0
    %144 = vmatprep.subr.mxu0 0.0
    %145 = vmatpush1.msra.mxu0 0.0
    %146 = vmatprep.subr.mxu0 0.0
    %147 = vmatpush1.msra.mxu0 0.0
    %148 = vmatprep.subr.mxu0 0.0
    %149 = vmatpush1.msra.mxu0 0.0
    %150 = vmatprep.subr.mxu0 0.0
    %151 = vmatpush1.msra.mxu0 0.0
    %152 = vmatprep.subr.mxu0 0.0
    %153 = vmatpush1.msra.mxu0 0.0
    %154 = vmatprep.subr.mxu0 0.0
    %155 = vmatpush1.msra.mxu0 0.0
    %156 = vmatprep.subr.mxu0 0.0
    %157 = vmatpush1.msra.mxu0 0.0
    %158 = vmatprep.subr.mxu0 0.0
    %159 = vmatpush1.msra.mxu0 0.0
    %160 = vmatprep.subr.mxu0 0.0
    %161 = vmatpush1.msra.mxu0 0.0
    %162 = vmatprep.subr.mxu0 0.0
    %163 = vmatpush1.msra.mxu0 0.0
    %164 = vmatprep.subr.mxu0 0.0
    %165 = vmatpush1.msra.mxu0 0.0
    %166 = vmatprep.subr.mxu0 0.0
    %167 = vmatpush1.msra.mxu0 0.0
    %168 = vmatprep.subr.mxu0 0.0
    %169 = vmatpush1.msra.mxu0 0.0
    %170 = vmatprep.subr.mxu0 0.0
    %171 = vmatpush1.msra.mxu0 0.0
    %172 = vmatprep.subr.mxu0 0.0
    %173 = vmatpush1.msra.mxu0 0.0
    %174 = vmatprep.subr.mxu0 0.0
    %175 = vmatpush1.msra.mxu0 0.0
    %176 = vmatprep.subr.mxu0 0.0
    %177 = vmatpush1.msra.mxu0 0.0
    %178 = vmatprep.subr.mxu0 0.0
    %179 = vmatpush1.msra.mxu0 0.0
    %180 = vmatprep.subr.mxu0 0.0
    %181 = vmatpush1.msra.mxu0 0.0
    %182 = vmatprep.subr.mxu0 0.0
    %183 = vmatpush1.msra.mxu0 0.0
    %184 = vmatprep.subr.mxu0 0.0
    %185 = vmatpush1.msra.mxu0 0.0
    %186 = vmatprep.subr.mxu0 0.0
    %187 = vmatpush1.msra.mxu0 0.0
    %188 = vmatprep.subr.mxu0 0.0
    %189 = vmatpush1.msra.mxu0 0.0
    %190 = vmatprep.subr.mxu0 0.0
    %191 = vmatpush1.msra.mxu0 0.0
    %192 = vmatprep.subr.mxu0 0.0
    %193 = vmatpush1.msra.mxu0 0.0
    %194 = vmatprep.subr.mxu0 0.0
    %195 = vmatpush1.msra.mxu0 0.0
    %196 = vmatprep.subr.mxu0 0.0
    %197 = vmatpush1.msra.mxu0 0.0
    %198 = vmatprep.subr.mxu0 0.0
    %199 = vmatpush1.msra.mxu0 0.0
    %200 = vmatprep.mubr.f32.mxu0 0.0
    %201 = vmatmul.mubr.f32.gmra.mrb[0].mxu0 %v125
    %v202 = vpop.f32.mrb[0].mxu0
    %v203 = vadd.f32 0.0, %v202
    %v204 = vpop.f32.mrb[0].mxu0
    %v205 = vadd.f32 0.0, %v204
    %206 = vmatprep.mubr.f32.mxu0 0.0
    %207 = vmatmul.mubr.f32.gmra.mrb[0].mxu0 %v128
    %v208 = vpop.f32.mrb[0].mxu0
    %v209 = vadd.f32 0.0, %v208
    %v210 = vpop.f32.mrb[0].mxu0
    %v211 = vadd.f32 0.0, %v210
    %212 = vmatprep.mubr.f32.mxu0 0.0
    %213 = vmatmul.mubr.f32.gmra.mrb[0].mxu0 %v131
    %v214 = vpop.f32.mrb[0].mxu0
    %v215 = vadd.f32 0.0, %v214
    %v216 = vpop.f32.mrb[0].mxu0
    %v217 = vadd.f32 0.0, %v216
    %218 = vmatprep.mubr.f32.mxu0 0.0
    %219 = vmatmul.mubr.f32.gmra.mrb[0].mxu0 %v134
    %v220 = vpop.f32.mrb[0].mxu0
    %v221 = vadd.f32 0.0, %v220
    %v222 = vpop.f32.mrb[0].mxu0
    %v223 = vadd.f32 0.0, %v222
    %224 = vdwg.mxu0
    %225 = vmatprep.subr.mxu0 0.0
    %226 = vmatpush1.msra.mxu0 %v115
    %227 = vmatprep.subr.mxu0 0.0
    %228 = vmatpush1.msra.mxu0 %v118
    %229 = vmatprep.subr.mxu0 0.0
    %230 = vmatpush1.msra.mxu0 0.0
    %231 = vmatprep.subr.mxu0 0.0
    %232 = vmatpush1.msra.mxu0 0.0
    %233 = vmatprep.subr.mxu0 0.0
    %234 = vmatpush1.msra.mxu0 0.0
    %235 = vmatprep.subr.mxu0 0.0
    %236 = vmatpush1.msra.mxu0 0.0
    %237 = vmatprep.subr.mxu0 0.0
    %238 = vmatpush1.msra.mxu0 0.0
    %239 = vmatprep.subr.mxu0 0.0
    %240 = vmatpush1.msra.mxu0 0.0
    %241 = vmatprep.subr.mxu0 0.0
    %242 = vmatpush1.msra.mxu0 0.0
    %243 = vmatprep.subr.mxu0 0.0
    %244 = vmatpush1.msra.mxu0 0.0
    %245 = vmatprep.subr.mxu0 0.0
    %246 = vmatpush1.msra.mxu0 0.0
    %247 = vmatprep.subr.mxu0 0.0
    %248 = vmatpush1.msra.mxu0 0.0
    %249 = vmatprep.subr.mxu0 0.0
    %250 = vmatpush1.msra.mxu0 0.0
    %251 = vmatprep.subr.mxu0 0.0
    %252 = vmatpush1.msra.mxu0 0.0
    %253 = vmatprep.subr.mxu0 0.0
    %254 = vmatpush1.msra.mxu0 0.0
    %255 = vmatprep.subr.mxu0 0.0
    %256 = vmatpush1.msra.mxu0 0.0
    %257 = vmatprep.subr.mxu0 0.0
    %258 = vmatpush1.msra.mxu0 0.0
    %259 = vmatprep.subr.mxu0 0.0
    %260 = vmatpush1.msra.mxu0 0.0
    %261 = vmatprep.subr.mxu0 0.0
    %262 = vmatpush1.msra.mxu0 0.0
    %263 = vmatprep.subr.mxu0 0.0
    %264 = vmatpush1.msra.mxu0 0.0
    %265 = vmatprep.subr.mxu0 0.0
    %266 = vmatpush1.msra.mxu0 0.0
    %267 = vmatprep.subr.mxu0 0.0
    %268 = vmatpush1.msra.mxu0 0.0
    %269 = vmatprep.subr.mxu0 0.0
    %270 = vmatpush1.msra.mxu0 0.0
    %271 = vmatprep.subr.mxu0 0.0
    %272 = vmatpush1.msra.mxu0 0.0
    %273 = vmatprep.subr.mxu0 0.0
    %274 = vmatpush1.msra.mxu0 0.0
    %275 = vmatprep.subr.mxu0 0.0
    %276 = vmatpush1.msra.mxu0 0.0
    %277 = vmatprep.subr.mxu0 0.0
    %278 = vmatpush1.msra.mxu0 0.0
    %279 = vmatprep.subr.mxu0 0.0
    %280 = vmatpush1.msra.mxu0 0.0
    %281 = vmatprep.subr.mxu0 0.0
    %282 = vmatpush1.msra.mxu0 0.0
    %283 = vmatprep.subr.mxu0 0.0
    %284 = vmatpush1.msra.mxu0 0.0
    %285 = vmatprep.subr.mxu0 0.0
    %286 = vmatpush1.msra.mxu0 0.0
    %287 = vmatprep.subr.mxu0 0.0
    %288 = vmatpush1.msra.mxu0 0.0
    %289 = vmatprep.mubr.f32.mxu0 0.0
    %290 = vmatmul.mubr.f32.gmra.mrb[0].mxu0 %v125
    %v291 = vpop.f32.mrb[0].mxu0
    %v292 = vadd.f32 0.0, %v291
    %v293 = vpop.f32.mrb[0].mxu0
    %294 = vmatprep.mubr.f32.mxu0 0.0
    %295 = vmatmul.mubr.f32.gmra.mrb[0].mxu0 %v128
    %v296 = vpop.f32.mrb[0].mxu0
    %v297 = vadd.f32 0.0, %v296
    %v298 = vpop.f32.mrb[0].mxu0
    %299 = vmatprep.mubr.f32.mxu0 0.0
    %300 = vmatmul.mubr.f32.gmra.mrb[0].mxu0 %v131
    %v301 = vpop.f32.mrb[0].mxu0
    %v302 = vadd.f32 0.0, %v301
    %v303 = vpop.f32.mrb[0].mxu0
    %304 = vmatprep.mubr.f32.mxu0 0.0
    %305 = vmatmul.mubr.f32.gmra.mrb[0].mxu0 %v134
    %v306 = vpop.f32.mrb[0].mxu0
    %v307 = vadd.f32 0.0, %v306
    %v308 = vpop.f32.mrb[0].mxu0
    %309 = vdwg.mxu0
    %v310 = vmax.f32 %v203, 0.0
    %v311 = vmax.f32 %v205, 0.0
    %v312 = vmax.f32 %v292, 0.0
    %v313 = vmax.f32 %v209, 0.0
    %v314 = vmax.f32 %v211, 0.0
    %v315 = vmax.f32 %v297, 0.0
    %v316 = vmax.f32 %v215, 0.0
    %v317 = vmax.f32 %v217, 0.0
    %v318 = vmax.f32 %v302, 0.0
    %v319 = vmax.f32 %v221, 0.0
    %v320 = vmax.f32 %v223, 0.0
    %v321 = vmax.f32 %v307, 0.0
    %v322 = vld [vmem:[%s2] sm:$0xff]
    %v323 = vld [vmem:[%s2 + $0x8] sm:$0xff]
    %v324 = vld [vmem:[%s4] sm:$0xff]
    %v325 = vld [vmem:[%s4 + $0x8] sm:$0xff]
    %327 = vset.pattern.permute.xlu0 0
    %328 = vperm.xlu0 %327, %v324
    %v329 = vpop.permute.xlu0 %328
    %332 = vset.pattern.permute.xlu0 0
    %333 = vperm.xlu0 %332, %v325
    %v334 = vpop.permute.xlu0 %333
    %vm336 = vcmask 261120
    %v338 = vsel %vm336, %v322, 0
    %v341 = vsel %vm336, %v323, 0
    %343 = vmatprep.subr.mxu0 %v311
    %344 = vmatpush1.msra.mxu0 %v310
    %345 = vmatprep.subr.mxu0 %v314
    %346 = vmatpush1.msra.mxu0 %v313
    %347 = vmatprep.subr.mxu0 %v317
    %348 = vmatpush1.msra.mxu0 %v316
    %349 = vmatprep.subr.mxu0 %v320
    %350 = vmatpush1.msra.mxu0 %v319
    %351 = vmatprep.subr.mxu0 0.0
    %352 = vmatpush1.msra.mxu0 0.0
    %353 = vmatprep.subr.mxu0 0.0
    %354 = vmatpush1.msra.mxu0 0.0
    %355 = vmatprep.subr.mxu0 0.0
    %356 = vmatpush1.msra.mxu0 0.0
    %357 = vmatprep.subr.mxu0 0.0
    %358 = vmatpush1.msra.mxu0 0.0
    %359 = vmatprep.subr.mxu0 0.0
    %360 = vmatpush1.msra.mxu0 0.0
    %361 = vmatprep.subr.mxu0 0.0
    %362 = vmatpush1.msra.mxu0 0.0
    %363 = vmatprep.subr.mxu0 0.0
    %364 = vmatpush1.msra.mxu0 0.0
    %365 = vmatprep.subr.mxu0 0.0
    %366 = vmatpush1.msra.mxu0 0.0
    %367 = vmatprep.subr.mxu0 0.0
    %368 = vmatpush1.msra.mxu0 0.0
    %369 = vmatprep.subr.mxu0 0.0
    %370 = vmatpush1.msra.mxu0 0.0
    %371 = vmatprep.subr.mxu0 0.0
    %372 = vmatpush1.msra.mxu0 0.0
    %373 = vmatprep.subr.mxu0 0.0
    %374 = vmatpush1.msra.mxu0 0.0
    %375 = vmatprep.subr.mxu0 0.0
    %376 = vmatpush1.msra.mxu0 0.0
    %377 = vmatprep.subr.mxu0 0.0
    %378 = vmatpush1.msra.mxu0 0.0
    %379 = vmatprep.subr.mxu0 0.0
    %380 = vmatpush1.msra.mxu0 0.0
    %381 = vmatprep.subr.mxu0 0.0
    %382 = vmatpush1.msra.mxu0 0.0
    %383 = vmatprep.subr.mxu0 0.0
    %384 = vmatpush1.msra.mxu0 0.0
    %385 = vmatprep.subr.mxu0 0.0
    %386 = vmatpush1.msra.mxu0 0.0
    %387 = vmatprep.subr.mxu0 0.0
    %388 = vmatpush1.msra.mxu0 0.0
    %389 = vmatprep.subr.mxu0 0.0
    %390 = vmatpush1.msra.mxu0 0.0
    %391 = vmatprep.subr.mxu0 0.0
    %392 = vmatpush1.msra.mxu0 0.0
    %393 = vmatprep.subr.mxu0 0.0
    %394 = vmatpush1.msra.mxu0 0.0
    %395 = vmatprep.subr.mxu0 0.0
    %396 = vmatpush1.msra.mxu0 0.0
    %397 = vmatprep.subr.mxu0 0.0
    %398 = vmatpush1.msra.mxu0 0.0
    %399 = vmatprep.subr.mxu0 0.0
    %400 = vmatpush1.msra.mxu0 0.0
    %401 = vmatprep.subr.mxu0 0.0
    %402 = vmatpush1.msra.mxu0 0.0
    %403 = vmatprep.subr.mxu0 0.0
    %404 = vmatpush1.msra.mxu0 0.0
    %405 = vmatprep.subr.mxu0 0.0
    %406 = vmatpush1.msra.mxu0 0.0
    %407 = vmatprep.mubr.f32.mxu0 0.0
    %408 = vmatmul.mubr.f32.gmra.mrb[0].mxu0 %v338
    %v409 = vpop.f32.mrb[0].mxu0
    %v410 = vadd.f32 %v329, %v409
    %v411 = vpop.f32.mrb[0].mxu0
    %v412 = vadd.f32 %v329, %v411
    %413 = vmatprep.mubr.f32.mxu0 0.0
    %414 = vmatmul.mubr.f32.gmra.mrb[0].mxu0 %v341
    %v415 = vpop.f32.mrb[0].mxu0
    %v416 = vadd.f32 %v334, %v415
    %v417 = vpop.f32.mrb[0].mxu0
    %v418 = vadd.f32 %v334, %v417
    %419 = vdwg.mxu0
    %420 = vmatprep.subr.mxu0 0.0
    %421 = vmatpush1.msra.mxu0 %v312
    %422 = vmatprep.subr.mxu0 0.0
    %423 = vmatpush1.msra.mxu0 %v315
    %424 = vmatprep.subr.mxu0 0.0
    %425 = vmatpush1.msra.mxu0 %v318
    %426 = vmatprep.subr.mxu0 0.0
    %427 = vmatpush1.msra.mxu0 %v321
    %428 = vmatprep.subr.mxu0 0.0
    %429 = vmatpush1.msra.mxu0 0.0
    %430 = vmatprep.subr.mxu0 0.0
    %431 = vmatpush1.msra.mxu0 0.0
    %432 = vmatprep.subr.mxu0 0.0
    %433 = vmatpush1.msra.mxu0 0.0
    %434 = vmatprep.subr.mxu0 0.0
    %435 = vmatpush1.msra.mxu0 0.0
    %436 = vmatprep.subr.mxu0 0.0
    %437 = vmatpush1.msra.mxu0 0.0
    %438 = vmatprep.subr.mxu0 0.0
    %439 = vmatpush1.msra.mxu0 0.0
    %440 = vmatprep.subr.mxu0 0.0
    %441 = vmatpush1.msra.mxu0 0.0
    %442 = vmatprep.subr.mxu0 0.0
    %443 = vmatpush1.msra.mxu0 0.0
    %444 = vmatprep.subr.mxu0 0.0
    %445 = vmatpush1.msra.mxu0 0.0
    %446 = vmatprep.subr.mxu0 0.0
    %447 = vmatpush1.msra.mxu0 0.0
    %448 = vmatprep.subr.mxu0 0.0
    %449 = vmatpush1.msra.mxu0 0.0
    %450 = vmatprep.subr.mxu0 0.0
    %451 = vmatpush1.msra.mxu0 0.0
    %452 = vmatprep.subr.mxu0 0.0
    %453 = vmatpush1.msra.mxu0 0.0
    %454 = vmatprep.subr.mxu0 0.0
    %455 = vmatpush1.msra.mxu0 0.0
    %456 = vmatprep.subr.mxu0 0.0
    %457 = vmatpush1.msra.mxu0 0.0
    %458 = vmatprep.subr.mxu0 0.0
    %459 = vmatpush1.msra.mxu0 0.0
    %460 = vmatprep.subr.mxu0 0.0
    %461 = vmatpush1.msra.mxu0 0.0
    %462 = vmatprep.subr.mxu0 0.0
    %463 = vmatpush1.msra.mxu0 0.0
    %464 = vmatprep.subr.mxu0 0.0
    %465 = vmatpush1.msra.mxu0 0.0
    %466 = vmatprep.subr.mxu0 0.0
    %467 = vmatpush1.msra.mxu0 0.0
    %468 = vmatprep.subr.mxu0 0.0
    %469 = vmatpush1.msra.mxu0 0.0
    %470 = vmatprep.subr.mxu0 0.0
    %471 = vmatpush1.msra.mxu0 0.0
    %472 = vmatprep.subr.mxu0 0.0
    %473 = vmatpush1.msra.mxu0 0.0
    %474 = vmatprep.subr.mxu0 0.0
    %475 = vmatpush1.msra.mxu0 0.0
    %476 = vmatprep.subr.mxu0 0.0
    %477 = vmatpush1.msra.mxu0 0.0
    %478 = vmatprep.subr.mxu0 0.0
    %479 = vmatpush1.msra.mxu0 0.0
    %480 = vmatprep.subr.mxu0 0.0
    %481 = vmatpush1.msra.mxu0 0.0
    %482 = vmatprep.subr.mxu0 0.0
    %483 = vmatpush1.msra.mxu0 0.0
    %484 = vmatprep.mubr.f32.mxu0 0.0
    %485 = vmatmul.mubr.f32.gmra.mrb[0].mxu0 %v338
    %v486 = vpop.f32.mrb[0].mxu0
    %v487 = vadd.f32 %v329, %v486
    %v488 = vpop.f32.mrb[0].mxu0
    %489 = vmatprep.mubr.f32.mxu0 0.0
    %490 = vmatmul.mubr.f32.gmra.mrb[0].mxu0 %v341
    %v491 = vpop.f32.mrb[0].mxu0
    %v492 = vadd.f32 %v334, %v491
    %v493 = vpop.f32.mrb[0].mxu0
    %494 = vdwg.mxu0
    %v495 = vmax.f32 %v410, 0.0
    %v496 = vmax.f32 %v412, 0.0
    %v497 = vmax.f32 %v487, 0.0
    %v498 = vmax.f32 %v416, 0.0
    %v499 = vmax.f32 %v418, 0.0
    %v500 = vmax.f32 %v492, 0.0
    %v501 = vld [vmem:[%s3] sm:$0xff]
    %v502 = vld [vmem:[%s4 + $0x10] sm:$0xff]
    %504 = vset.pattern.permute.xlu0 0
    %505 = vperm.xlu0 %504, %v502
    %v506 = vpop.permute.xlu0 %505
    %v509 = vsel %vm123, %v501, 0
    %511 = vmatprep.subr.mxu0 %v496
    %512 = vmatpush1.msra.mxu0 %v495
    %513 = vmatprep.subr.mxu0 %v499
    %514 = vmatpush1.msra.mxu0 %v498
    %515 = vmatprep.subr.mxu0 0.0
    %516 = vmatpush1.msra.mxu0 0.0
    %517 = vmatprep.subr.mxu0 0.0
    %518 = vmatpush1.msra.mxu0 0.0
    %519 = vmatprep.subr.mxu0 0.0
    %520 = vmatpush1.msra.mxu0 0.0
    %521 = vmatprep.subr.mxu0 0.0
    %522 = vmatpush1.msra.mxu0 0.0
    %523 = vmatprep.subr.mxu0 0.0
    %524 = vmatpush1.msra.mxu0 0.0
    %525 = vmatprep.subr.mxu0 0.0
    %526 = vmatpush1.msra.mxu0 0.0
    %527 = vmatprep.subr.mxu0 0.0
    %528 = vmatpush1.msra.mxu0 0.0
    %529 = vmatprep.subr.mxu0 0.0
    %530 = vmatpush1.msra.mxu0 0.0
    %531 = vmatprep.subr.mxu0 0.0
    %532 = vmatpush1.msra.mxu0 0.0
    %533 = vmatprep.subr.mxu0 0.0
    %534 = vmatpush1.msra.mxu0 0.0
    %535 = vmatprep.subr.mxu0 0.0
    %536 = vmatpush1.msra.mxu0 0.0
    %537 = vmatprep.subr.mxu0 0.0
    %538 = vmatpush1.msra.mxu0 0.0
    %539 = vmatprep.subr.mxu0 0.0
    %540 = vmatpush1.msra.mxu0 0.0
    %541 = vmatprep.subr.mxu0 0.0
    %542 = vmatpush1.msra.mxu0 0.0
    %543 = vmatprep.subr.mxu0 0.0
    %544 = vmatpush1.msra.mxu0 0.0
    %545 = vmatprep.subr.mxu0 0.0
    %546 = vmatpush1.msra.mxu0 0.0
    %547 = vmatprep.subr.mxu0 0.0
    %548 = vmatpush1.msra.mxu0 0.0
    %549 = vmatprep.subr.mxu0 0.0
    %550 = vmatpush1.msra.mxu0 0.0
    %551 = vmatprep.subr.mxu0 0.0
    %552 = vmatpush1.msra.mxu0 0.0
    %553 = vmatprep.subr.mxu0 0.0
    %554 = vmatpush1.msra.mxu0 0.0
    %555 = vmatprep.subr.mxu0 0.0
    %556 = vmatpush1.msra.mxu0 0.0
    %557 = vmatprep.subr.mxu0 0.0
    %558 = vmatpush1.msra.mxu0 0.0
    %559 = vmatprep.subr.mxu0 0.0
    %560 = vmatpush1.msra.mxu0 0.0
    %561 = vmatprep.subr.mxu0 0.0
    %562 = vmatpush1.msra.mxu0 0.0
    %563 = vmatprep.subr.mxu0 0.0
    %564 = vmatpush1.msra.mxu0 0.0
    %565 = vmatprep.subr.mxu0 0.0
    %566 = vmatpush1.msra.mxu0 0.0
    %567 = vmatprep.subr.mxu0 0.0
    %568 = vmatpush1.msra.mxu0 0.0
    %569 = vmatprep.subr.mxu0 0.0
    %570 = vmatpush1.msra.mxu0 0.0
    %571 = vmatprep.subr.mxu0 0.0
    %572 = vmatpush1.msra.mxu0 0.0
    %573 = vmatprep.subr.mxu0 0.0
    %574 = vmatpush1.msra.mxu0 0.0
    %575 = vmatprep.mubr.f32.mxu0 0.0
    %576 = vmatmul.mubr.f32.gmra.mrb[0].mxu0 %v509
    %v577 = vpop.f32.mrb[0].mxu0
    %v578 = vadd.f32 %v506, %v577
    %v579 = vpop.f32.mrb[0].mxu0
    %v580 = vadd.f32 %v506, %v579
    %581 = vdwg.mxu0
    %582 = vmatprep.subr.mxu0 0.0
    %583 = vmatpush1.msra.mxu0 %v497
    %584 = vmatprep.subr.mxu0 0.0
    %585 = vmatpush1.msra.mxu0 %v500
    %586 = vmatprep.subr.mxu0 0.0
    %587 = vmatpush1.msra.mxu0 0.0
    %588 = vmatprep.subr.mxu0 0.0
    %589 = vmatpush1.msra.mxu0 0.0
    %590 = vmatprep.subr.mxu0 0.0
    %591 = vmatpush1.msra.mxu0 0.0
    %592 = vmatprep.subr.mxu0 0.0
    %593 = vmatpush1.msra.mxu0 0.0
    %594 = vmatprep.subr.mxu0 0.0
    %595 = vmatpush1.msra.mxu0 0.0
    %596 = vmatprep.subr.mxu0 0.0
    %597 = vmatpush1.msra.mxu0 0.0
    %598 = vmatprep.subr.mxu0 0.0
    %599 = vmatpush1.msra.mxu0 0.0
    %600 = vmatprep.subr.mxu0 0.0
    %601 = vmatpush1.msra.mxu0 0.0
    %602 = vmatprep.subr.mxu0 0.0
    %603 = vmatpush1.msra.mxu0 0.0
    %604 = vmatprep.subr.mxu0 0.0
    %605 = vmatpush1.msra.mxu0 0.0
    %606 = vmatprep.subr.mxu0 0.0
    %607 = vmatpush1.msra.mxu0 0.0
    %608 = vmatprep.subr.mxu0 0.0
    %609 = vmatpush1.msra.mxu0 0.0
    %610 = vmatprep.subr.mxu0 0.0
    %611 = vmatpush1.msra.mxu0 0.0
    %612 = vmatprep.subr.mxu0 0.0
    %613 = vmatpush1.msra.mxu0 0.0
    %614 = vmatprep.subr.mxu0 0.0
    %615 = vmatpush1.msra.mxu0 0.0
    %616 = vmatprep.subr.mxu0 0.0
    %617 = vmatpush1.msra.mxu0 0.0
    %618 = vmatprep.subr.mxu0 0.0
    %619 = vmatpush1.msra.mxu0 0.0
    %620 = vmatprep.subr.mxu0 0.0
    %621 = vmatpush1.msra.mxu0 0.0
    %622 = vmatprep.subr.mxu0 0.0
    %623 = vmatpush1.msra.mxu0 0.0
    %624 = vmatprep.subr.mxu0 0.0
    %625 = vmatpush1.msra.mxu0 0.0
    %626 = vmatprep.subr.mxu0 0.0
    %627 = vmatpush1.msra.mxu0 0.0
    %628 = vmatprep.subr.mxu0 0.0
    %629 = vmatpush1.msra.mxu0 0.0
    %630 = vmatprep.subr.mxu0 0.0
    %631 = vmatpush1.msra.mxu0 0.0
    %632 = vmatprep.subr.mxu0 0.0
    %633 = vmatpush1.msra.mxu0 0.0
    %634 = vmatprep.subr.mxu0 0.0
    %635 = vmatpush1.msra.mxu0 0.0
    %636 = vmatprep.subr.mxu0 0.0
    %637 = vmatpush1.msra.mxu0 0.0
    %638 = vmatprep.subr.mxu0 0.0
    %639 = vmatpush1.msra.mxu0 0.0
    %640 = vmatprep.subr.mxu0 0.0
    %641 = vmatpush1.msra.mxu0 0.0
    %642 = vmatprep.subr.mxu0 0.0
    %643 = vmatpush1.msra.mxu0 0.0
    %644 = vmatprep.subr.mxu0 0.0
    %645 = vmatpush1.msra.mxu0 0.0
    %646 = vmatprep.mubr.f32.mxu0 0.0
    %647 = vmatmul.mubr.f32.gmra.mrb[0].mxu0 %v509
    %v648 = vpop.f32.mrb[0].mxu0
    %v649 = vadd.f32 %v506, %v648
    %v650 = vpop.f32.mrb[0].mxu0
    %651 = vdwg.mxu0
    %v652 = vmax.f32 %v578, 0.0
    %v653 = vmax.f32 %v580, 0.0
    %v654 = vmax.f32 %v649, 0.0
    %v655 = vld [vmem:[%s4] sm:$0xff]
    %v656 = vld [vmem:[%s4 + $0x8] sm:$0x1]
    %658 = vset.pattern.permute.xlu0 1
    %659 = vperm.xlu0 %658, %v655
    %v660 = vpop.permute.xlu0 %659
    %v662 = vmul.f32 %v652, %v660
    %v663 = vmul.f32 %v653, %v660
    %v664 = vmul.f32 %v654, %v660
    %v665 = vrot.slane %v662, 4
    %v666 = vadd.f32 %v662, %v665
    %v667 = vrot.slane %v666, 2
    %v668 = vadd.f32 %v666, %v667
    %v669 = vrot.slane %v668, 1
    %v670 = vadd.f32 %v668, %v669
    %v671 = vrot.slane %v663, 4
    %v672 = vadd.f32 %v663, %v671
    %v673 = vrot.slane %v672, 2
    %v674 = vadd.f32 %v672, %v673
    %v675 = vrot.slane %v674, 1
    %v676 = vadd.f32 %v674, %v675
    %v677 = vrot.slane %v664, 4
    %v678 = vadd.f32 %v664, %v677
    %v679 = vrot.slane %v678, 2
    %v680 = vadd.f32 %v678, %v679
    %v681 = vrot.slane %v680, 1
    %v682 = vadd.f32 %v680, %v681
    %684 = vset.pattern.permute.xlu0 1
    %685 = vperm.xlu0 %684, %v656
    %v686 = vpop.permute.xlu0 %685
    %v688 = vadd.f32 %v670, %v686
    %v689 = vadd.f32 %v676, %v686
    %v690 = vadd.f32 %v682, %v686
    %v694 = vcombine.low %v688, %v689
    %v696 = vunpack.c.l.s4 1966171168
    %v697 = vunpack.c.0.s8 %v696
    %v698 = vlaneseq
    %v699 = vshrl.u32 %v698, 7
    %v700 = vsub.s32 %v697, %v699
    %v701 = vrot.slane %v694, %v700
    %v703 = vunpack.c.l.s4 1966171168
    %v704 = vunpack.c.0.s8 %v703
    %v705 = vlaneseq
    %v706 = vshrl.u32 %v705, 7
    %v707 = vsub.s32 %v704, %v706
    %v708 = vrot.slane %v690, %v707
    %v709 = vcombine.low %v701, %v708
    %v711 = vunpack.c.l.s4 1966171168
    %v712 = vunpack.c.0.s8 %v711
    %v713 = vlaneseq
    %v714 = vshrl.u32 %v713, 7
    %v715 = vsub.s32 %v712, %v714
    %v716 = vrot.slane %v709, %v715
    %v718 = vlaneseq
    %vm719 = vcmp.ge.s32.totalorder %v718, 0
    %vm720 = vcmp.lt.s32.totalorder %v718, 384
    %vm721 = vmand %vm719, %vm720
    %722 = vst.msk [vmem:[#allocation2] sm:$0x7] %vm721, %v716
    // Predicated region
    $region22: #{tpu_custom_call.1} parent=1 // pred_check
      _
    $region23: #{tpu_custom_call.1} parent=1 // pred_check_branch
      %724 = sbr.rel (0) target = $region25
    $region24: #{tpu_custom_call.1} parent=1 // pred_region
      %s726 = ssub.s32 48, 48
      %727 = vsyncadd [#allocation3], %s726
      %s729 = sshll.u32 [#allocation2], 4
      %s730 = int_to_ptr.vmem [resolvable:$true] %s729
      %732 = dma.vmem_to_hbm [thread:$0]  %s730, 48, %s5, [#allocation3]
    $region25: #{tpu_custom_call.1} parent=1 // pred_fallthru
      _
    // Predicated region
    $region26: #{tpu_custom_call.1} parent=1 // pred_check
      _
    $region27: #{tpu_custom_call.1} parent=1 // pred_check_branch
      %734 = sbr.rel (0) target = $region29
    $region28: #{tpu_custom_call.1} parent=1 // pred_region
      %735 = dma.done [#allocation3], 48
    $region29: #{tpu_custom_call.1} parent=1 // pred_fallthru
      _
    %736 = vsyncpa [#allocation3], 1

</llo_original>
